<compile_context>
chip_gen: v7x
topology: tpu7x:2x2x1
jax: 0.10.0
libtpu: 0.0.40
codegen_flags: <defaults>
</compile_context>

<pallas_src>
import functools

import jax
import jax.numpy as jnp
from jax import lax
from jax.experimental import pallas as pl
from jax.experimental.pallas import tpu as pltpu


def _round_up(a, b):
    return (a + b - 1) // b * b


def _round_down(a, b):
    return a // b * b


def gate_kernel(x_ref, wt_ref, *rest, n_groups, n_limited_groups, topk,
                route_scale, score_func, out_lanes, has_bias, gather_original):
    if has_bias:
        bias_ref, out_ref = rest
    else:
        (out_ref,) = rest

    # MXU matmul straight from the refs; accumulate in f32.
    logits = jnp.dot(x_ref[...], wt_ref[...],
                     preferred_element_type=jnp.float32)          # [Tb, E]
    tb, n_experts = logits.shape

    if score_func == 'softmax':
        orig = jax.nn.softmax(logits, axis=-1)
    else:                                                         # 'sigmoid'
        orig = jax.nn.sigmoid(logits)

    # add_bias: identity when bias is None.
    routed = orig + bias_ref[...] if has_bias else orig           # [Tb, E]

    neg_inf = jnp.float32(-jnp.inf)
    eiota = lax.broadcasted_iota(jnp.int32, (tb, n_experts), 1)

    if n_groups > 1:
        gsz = n_experts // n_groups
        gslices = [routed[:, g * gsz:(g + 1) * gsz] for g in range(n_groups)]

        if has_bias:
            # group_scores = top-2 sum per group (duplicate-safe: mask only
            # the first occurrence of the max before taking the second max).
            liota = lax.broadcasted_iota(jnp.int32, (tb, gsz), 1)
            gcols = []
            for s in gslices:
                m1 = jnp.max(s, axis=-1, keepdims=True)
                i1 = jnp.min(jnp.where(s == m1, liota, gsz),
                             axis=-1, keepdims=True)
                m2 = jnp.max(jnp.where(liota == i1, neg_inf, s),
                             axis=-1, keepdims=True)
                gcols.append(m1 + m2)
            gscores = jnp.concatenate(gcols, axis=-1)             # [Tb, G]
        else:
            # group_scores = amax per group.
            gscores = jnp.concatenate(
                [jnp.max(s, axis=-1, keepdims=True) for s in gslices],
                axis=-1)                                          # [Tb, G]

        # Keep the top n_limited_groups groups (lowest-index tie break).
        giota = lax.broadcasted_iota(jnp.int32, (tb, n_groups), 1)
        keep = jnp.zeros((tb, n_groups), jnp.float32)
        work = gscores
        for _ in range(n_limited_groups):
            m = jnp.max(work, axis=-1, keepdims=True)
            gsel = jnp.min(jnp.where(work == m, giota, n_groups),
                           axis=-1, keepdims=True)
            hit = giota == gsel
            keep = jnp.where(hit, 1.0, keep)
            work = jnp.where(hit, neg_inf, work)

        # Mask dropped groups exactly like torch: scores * mask.
        routed = jnp.concatenate(
            [gslices[g] * keep[:, g:g + 1] for g in range(n_groups)], axis=-1)

    # Top-k experts on the (group-masked) routing scores.
    work = routed
    w_cols, i_cols = [], []
    for _ in range(topk):
        m = jnp.max(work, axis=-1, keepdims=True)                 # [Tb, 1]
        idx = jnp.min(jnp.where(work == m, eiota, n_experts),
                      axis=-1, keepdims=True)                     # [Tb, 1]
        if gather_original:
            # weights = original_scores.gather(1, indices)  (bias path).
            w = jnp.sum(jnp.where(eiota == idx, orig, 0.0),
                        axis=-1, keepdims=True)
        else:
            # bias=None & topk <= kept experts: masked max IS the original
            # (strictly positive) score -> no gather needed.
            w = m
        w_cols.append(w)
        i_cols.append(idx)
        work = jnp.where(eiota == idx, neg_inf, work)

    weights = jnp.concatenate(w_cols, axis=-1)                    # [Tb, topk]
    indices = jnp.concatenate(i_cols, axis=-1)                    # [Tb, topk]

    if score_func == 'sigmoid':
        weights = weights / jnp.sum(weights, axis=-1, keepdims=True)
    weights = weights * jnp.float32(route_scale)

    # Lane-dense packed output: weights in lanes [0, topk), bitcast int32
    # indices in lanes [topk, 2*topk), zero padding up to out_lanes.
    idx_bits = pltpu.bitcast(indices.astype(jnp.int32), jnp.float32)
    parts = [weights, idx_bits]
    pad = out_lanes - 2 * topk
    if pad:
        parts.append(jnp.zeros((tb, pad), jnp.float32))
    out_ref[...] = jnp.concatenate(parts, axis=-1)


def gate_forward(x, weight, bias=None, *, n_groups, n_limited_groups, topk,
                 route_scale, score_func='sigmoid', block_t=1024,
                 vmem_budget_bytes=32 * 1024 * 1024):
    t, dim = x.shape
    n_experts = weight.shape[0]
    out_dtype = x.dtype
    has_bias = bias is not None

    if n_groups > 1:
        assert n_experts % n_groups == 0
        kept = n_limited_groups * (n_experts // n_groups)
    else:
        kept = n_experts
    assert topk <= n_experts
    # Gather original scores whenever "masked max == original" cannot be used.
    gather_original = has_bias or topk > kept

    out_lanes = max(128, _round_up(2 * topk, 128))

    # Token-block size: as big as possible while the (double-buffered) x tile,
    # resident weight tile and packed output tile stay inside scoped VMEM.
    bytes_per_row = dim * x.dtype.itemsize + out_lanes * 4
    fixed = dim * n_experts * weight.dtype.itemsize
    budget = vmem_budget_bytes // 3                 # headroom for dbl-buffering
    cap = _round_down(max(8, (budget - fixed) // max(1, bytes_per_row)), 8)
    block_t = max(8, min(block_t, max(8, cap), _round_up(t, 8)))
    t_pad = _round_up(t, block_t)
    if t_pad != t:
        x = jnp.pad(x, ((0, t_pad - t), (0, 0)))

    wt = weight.T                                   # [dim, E]: experts on lanes

    kernel = functools.partial(
        gate_kernel,
        n_groups=n_groups, n_limited_groups=n_limited_groups, topk=topk,
        route_scale=route_scale, score_func=score_func, out_lanes=out_lanes,
        has_bias=has_bias, gather_original=gather_original)

    in_specs = [
        pl.BlockSpec((block_t, dim), lambda i: (i, 0)),
        pl.BlockSpec((dim, n_experts), lambda i: (0, 0)),   # resident weight
    ]
    operands = [x, wt]
    if has_bias:
        in_specs.append(pl.BlockSpec((1, n_experts), lambda i: (0, 0)))
        operands.append(jnp.reshape(bias, (1, n_experts)).astype(jnp.float32))

    packed = pl.pallas_call(
        kernel,
        out_shape=jax.ShapeDtypeStruct((t_pad, out_lanes), jnp.float32),
        grid_spec=pltpu.PrefetchScalarGridSpec(
            num_scalar_prefetch=0,
            grid=(t_pad // block_t,),
            in_specs=in_specs,
            out_specs=pl.BlockSpec((block_t, out_lanes), lambda i: (i, 0)),
        ),
        compiler_params=pltpu.CompilerParams(
            dimension_semantics=("parallel",),
            vmem_limit_bytes=vmem_budget_bytes),
    )(*operands)

    weights = packed[:t, :topk].astype(out_dtype)
    indices = lax.bitcast_convert_type(packed[:t, topk:2 * topk], jnp.int32)
    return weights, indices


def gate_ref(x, weight, bias=None, *, n_groups, n_limited_groups, topk,
             route_scale, score_func='sigmoid'):
    """Pure-JAX reference mirroring the PyTorch forward (both bias paths)."""
    logits = x.astype(jnp.float32) @ weight.T.astype(jnp.float32)
    if score_func == 'softmax':
        scores = jax.nn.softmax(logits, axis=-1)
    else:
        scores = jax.nn.sigmoid(logits)
    orig = scores
    if bias is not None:
        scores = scores + bias.astype(jnp.float32)
    t, n_experts = scores.shape
    if n_groups > 1:
        s3 = scores.reshape(t, n_groups, -1)
        if bias is None:
            gs = s3.max(-1)                            # amax
        else:
            gs = lax.top_k(s3, 2)[0].sum(-1)           # top-2 sum
        gidx = lax.top_k(gs, n_limited_groups)[1]
        mask = jnp.zeros((t, n_groups), jnp.float32).at[
            jnp.arange(t)[:, None], gidx].set(1.0)
        scores = (s3 * mask[:, :, None]).reshape(t, n_experts)
    idx = lax.top_k(scores, topk)[1]
    w = jnp.take_along_axis(orig, idx, axis=1)
    if score_func == 'sigmoid':
        w = w / w.sum(-1, keepdims=True)
    w = w * route_scale
    return w.astype(x.dtype), idx.astype(jnp.int32)


if __name__ == "__main__":
    DIM, E = 32, 16
    N_GROUPS, N_LIMITED, TOPK = 4, 2, 4
    ROUTE_SCALE = 2.5
    SCORE_FUNC = 'sigmoid'

    key = jax.random.PRNGKey(0)
    kx, kw, kx2, kb = jax.random.split(key, 4)

    # --- Test 1: bias=None path (the module's dim != 7168 configuration). ---
    T1 = 16
    x1 = jax.random.normal(kx, (T1, DIM), dtype=jnp.float32)
    weight = jax.random.normal(kw, (E, DIM), dtype=jnp.float32) * 0.1

    w_out, i_out = gate_forward(
        x1, weight, n_groups=N_GROUPS, n_limited_groups=N_LIMITED,
        topk=TOPK, route_scale=ROUTE_SCALE, score_func=SCORE_FUNC)
    jax.block_until_ready((w_out, i_out))

    w_ref, i_ref = gate_ref(
        x1, weight, n_groups=N_GROUPS, n_limited_groups=N_LIMITED,
        topk=TOPK, route_scale=ROUTE_SCALE, score_func=SCORE_FUNC)

    assert w_out.shape == (T1, TOPK) and i_out.shape == (T1, TOPK)
    assert jnp.allclose(w_out, w_ref, atol=1e-5, rtol=1e-5)
    assert jnp.array_equal(i_out, i_ref)

    # --- Test 2: bias path (dim==7168 semantics) + ragged token count. ---
    T2 = 100
    x2 = jax.random.normal(kx2, (T2, DIM), dtype=jnp.float32)
    bias = jax.random.normal(kb, (E,), dtype=jnp.float32) * 0.1

    w_out2, i_out2 = gate_forward(
        x2, weight, bias, n_groups=N_GROUPS, n_limited_groups=N_LIMITED,
        topk=TOPK, route_scale=ROUTE_SCALE, score_func=SCORE_FUNC)
    jax.block_until_ready((w_out2, i_out2))

    w_ref2, i_ref2 = gate_ref(
        x2, weight, bias, n_groups=N_GROUPS, n_limited_groups=N_LIMITED,
        topk=TOPK, route_scale=ROUTE_SCALE, score_func=SCORE_FUNC)

    assert w_out2.shape == (T2, TOPK) and i_out2.shape == (T2, TOPK)
    assert jnp.allclose(w_out2, w_ref2, atol=1e-5, rtol=1e-5)
    assert jnp.array_equal(i_out2, i_ref2)

    print("KERNEL_OK")
</pallas_src>

<mosaic_0001>
module attributes {stable_mosaic.version = 11 : i64} {
  func.func @gate_kernel(%arg0: i32, %arg1: memref<16x32xf32, #tpu.memory_space<vmem>>, %arg2: memref<32x16xf32, #tpu.memory_space<vmem>>, %arg3: memref<16x128xf32, #tpu.memory_space<vmem>>) attributes {dimension_semantics = [#tpu.dimension_semantics<parallel>], iteration_bounds = array<i64: 1>, scalar_prefetch = 0 : i64, scratch_operands = 0 : i64, tpu.core_type = #tpu.core_type<tc>, window_params = [{transform_indices = @transform_0, window_bounds = array<i64: 16, 32>}, {pipeline_mode = #tpu.pipeline_mode<synchronous>, transform_indices = @transform_1, window_bounds = array<i64: 32, 16>}, {transform_indices = @transform_2, window_bounds = array<i64: 16, 128>}]} {
    %c0 = arith.constant 0 : index
    %c0_0 = arith.constant 0 : index
    %0 = vector.load %arg1[%c0, %c0_0] : memref<16x32xf32, #tpu.memory_space<vmem>>, vector<16x32xf32>
    %c0_1 = arith.constant 0 : index
    %c0_2 = arith.constant 0 : index
    %1 = vector.load %arg2[%c0_1, %c0_2] : memref<32x16xf32, #tpu.memory_space<vmem>>, vector<32x16xf32>
    %cst = arith.constant dense<0.000000e+00> : vector<16x16xf32>
    %2 = tpu.matmul %0, %1, %cst {dimension_numbers = #tpu.dot_dimension_numbers<[1], [0], [0], [1], [0, 0, 1, 1], [], []>} : vector<16x32xf32>, vector<32x16xf32>, vector<16x16xf32> -> vector<16x16xf32>
    %3 = arith.negf %2 : vector<16x16xf32>
    %4 = math.exp %3 : vector<16x16xf32>
    %cst_3 = arith.constant 1.000000e+00 : f32
    %5 = vector.broadcast %cst_3 : f32 to vector<16x16xf32>
    %6 = arith.addf %5, %4 : vector<16x16xf32>
    %7 = arith.divf %5, %6 : vector<16x16xf32>
    %8 = tpu.iota {dimensions = array<i32: 1>} : vector<16x16xi32>
    %9 = vector.extract_strided_slice %7 {offsets = [0, 0], sizes = [16, 4], strides = [1, 1]} : vector<16x16xf32> to vector<16x4xf32>
    %10 = vector.extract_strided_slice %7 {offsets = [0, 4], sizes = [16, 4], strides = [1, 1]} : vector<16x16xf32> to vector<16x4xf32>
    %11 = vector.extract_strided_slice %7 {offsets = [0, 8], sizes = [16, 4], strides = [1, 1]} : vector<16x16xf32> to vector<16x4xf32>
    %12 = vector.extract_strided_slice %7 {offsets = [0, 12], sizes = [16, 4], strides = [1, 1]} : vector<16x16xf32> to vector<16x4xf32>
    %cst_4 = arith.constant dense<0xFF800000> : vector<16xf32>
    %13 = vector.multi_reduction <maximumf>, %9, %cst_4 [1] : vector<16x4xf32> to vector<16xf32>
    %14 = vector.shape_cast %13 : vector<16xf32> to vector<16x1xf32>
    %cst_5 = arith.constant dense<0xFF800000> : vector<16xf32>
    %15 = vector.multi_reduction <maximumf>, %10, %cst_5 [1] : vector<16x4xf32> to vector<16xf32>
    %16 = vector.shape_cast %15 : vector<16xf32> to vector<16x1xf32>
    %cst_6 = arith.constant dense<0xFF800000> : vector<16xf32>
    %17 = vector.multi_reduction <maximumf>, %11, %cst_6 [1] : vector<16x4xf32> to vector<16xf32>
    %18 = vector.shape_cast %17 : vector<16xf32> to vector<16x1xf32>
    %cst_7 = arith.constant dense<0xFF800000> : vector<16xf32>
    %19 = vector.multi_reduction <maximumf>, %12, %cst_7 [1] : vector<16x4xf32> to vector<16xf32>
    %20 = vector.shape_cast %19 : vector<16xf32> to vector<16x1xf32>
    %21 = tpu.concatenate %14, %16, %18, %20 in 1 : vector<16x1xf32>, vector<16x1xf32>, vector<16x1xf32>, vector<16x1xf32> -> vector<16x4xf32>
    %22 = tpu.iota {dimensions = array<i32: 1>} : vector<16x4xi32>
    %cst_8 = arith.constant 0.000000e+00 : f32
    %23 = vector.broadcast %cst_8 : f32 to vector<16x4xf32>
    %cst_9 = arith.constant dense<0xFF800000> : vector<16xf32>
    %24 = vector.multi_reduction <maximumf>, %21, %cst_9 [1] : vector<16x4xf32> to vector<16xf32>
    %25 = vector.shape_cast %24 : vector<16xf32> to vector<16x1xf32>
    %26 = vector.broadcast %25 : vector<16x1xf32> to vector<16x4xf32>
    %27 = arith.cmpf oeq, %21, %26 : vector<16x4xf32>
    %c4_i32 = arith.constant 4 : i32
    %28 = vector.broadcast %c4_i32 : i32 to vector<16x4xi32>
    %29 = arith.select %27, %22, %28 : vector<16x4xi1>, vector<16x4xi32>
    %cst_10 = arith.constant dense<2147483647> : vector<16xi32>
    %30 = vector.multi_reduction <minsi>, %29, %cst_10 [1] : vector<16x4xi32> to vector<16xi32>
    %31 = vector.shape_cast %30 : vector<16xi32> to vector<16x1xi32>
    %32 = vector.broadcast %31 : vector<16x1xi32> to vector<16x4xi32>
    %33 = arith.cmpi eq, %22, %32 : vector<16x4xi32>
    %cst_11 = arith.constant 1.000000e+00 : f32
    %34 = vector.broadcast %cst_11 : f32 to vector<16x4xf32>
    %35 = arith.select %33, %34, %23 : vector<16x4xi1>, vector<16x4xf32>
    %cst_12 = arith.constant 0xFF800000 : f32
    %36 = vector.broadcast %cst_12 : f32 to vector<16x4xf32>
    %37 = arith.select %33, %36, %21 : vector<16x4xi1>, vector<16x4xf32>
    %cst_13 = arith.constant dense<0xFF800000> : vector<16xf32>
    %38 = vector.multi_reduction <maximumf>, %37, %cst_13 [1] : vector<16x4xf32> to vector<16xf32>
    %39 = vector.shape_cast %38 : vector<16xf32> to vector<16x1xf32>
    %40 = vector.broadcast %39 : vector<16x1xf32> to vector<16x4xf32>
    %41 = arith.cmpf oeq, %37, %40 : vector<16x4xf32>
    %c4_i32_14 = arith.constant 4 : i32
    %42 = vector.broadcast %c4_i32_14 : i32 to vector<16x4xi32>
    %43 = arith.select %41, %22, %42 : vector<16x4xi1>, vector<16x4xi32>
    %cst_15 = arith.constant dense<2147483647> : vector<16xi32>
    %44 = vector.multi_reduction <minsi>, %43, %cst_15 [1] : vector<16x4xi32> to vector<16xi32>
    %45 = vector.shape_cast %44 : vector<16xi32> to vector<16x1xi32>
    %46 = vector.broadcast %45 : vector<16x1xi32> to vector<16x4xi32>
    %47 = arith.cmpi eq, %22, %46 : vector<16x4xi32>
    %cst_16 = arith.constant 1.000000e+00 : f32
    %48 = vector.broadcast %cst_16 : f32 to vector<16x4xf32>
    %49 = arith.select %47, %48, %35 : vector<16x4xi1>, vector<16x4xf32>
    %50 = vector.extract_strided_slice %49 {offsets = [0, 0], sizes = [16, 1], strides = [1, 1]} : vector<16x4xf32> to vector<16x1xf32>
    %51 = vector.broadcast %50 : vector<16x1xf32> to vector<16x4xf32>
    %52 = arith.mulf %9, %51 : vector<16x4xf32>
    %53 = vector.extract_strided_slice %49 {offsets = [0, 1], sizes = [16, 1], strides = [1, 1]} : vector<16x4xf32> to vector<16x1xf32>
    %54 = vector.broadcast %53 : vector<16x1xf32> to vector<16x4xf32>
    %55 = arith.mulf %10, %54 : vector<16x4xf32>
    %56 = vector.extract_strided_slice %49 {offsets = [0, 2], sizes = [16, 1], strides = [1, 1]} : vector<16x4xf32> to vector<16x1xf32>
    %57 = vector.broadcast %56 : vector<16x1xf32> to vector<16x4xf32>
    %58 = arith.mulf %11, %57 : vector<16x4xf32>
    %59 = vector.extract_strided_slice %49 {offsets = [0, 3], sizes = [16, 1], strides = [1, 1]} : vector<16x4xf32> to vector<16x1xf32>
    %60 = vector.broadcast %59 : vector<16x1xf32> to vector<16x4xf32>
    %61 = arith.mulf %12, %60 : vector<16x4xf32>
    %62 = tpu.concatenate %52, %55, %58, %61 in 1 : vector<16x4xf32>, vector<16x4xf32>, vector<16x4xf32>, vector<16x4xf32> -> vector<16x16xf32>
    %cst_17 = arith.constant dense<0xFF800000> : vector<16xf32>
    %63 = vector.multi_reduction <maximumf>, %62, %cst_17 [1] : vector<16x16xf32> to vector<16xf32>
    %64 = vector.shape_cast %63 : vector<16xf32> to vector<16x1xf32>
    %65 = vector.broadcast %64 : vector<16x1xf32> to vector<16x16xf32>
    %66 = arith.cmpf oeq, %62, %65 : vector<16x16xf32>
    %c16_i32 = arith.constant 16 : i32
    %67 = vector.broadcast %c16_i32 : i32 to vector<16x16xi32>
    %68 = arith.select %66, %8, %67 : vector<16x16xi1>, vector<16x16xi32>
    %cst_18 = arith.constant dense<2147483647> : vector<16xi32>
    %69 = vector.multi_reduction <minsi>, %68, %cst_18 [1] : vector<16x16xi32> to vector<16xi32>
    %70 = vector.shape_cast %69 : vector<16xi32> to vector<16x1xi32>
    %71 = vector.broadcast %70 : vector<16x1xi32> to vector<16x16xi32>
    %72 = arith.cmpi eq, %8, %71 : vector<16x16xi32>
    %cst_19 = arith.constant 0xFF800000 : f32
    %73 = vector.broadcast %cst_19 : f32 to vector<16x16xf32>
    %74 = arith.select %72, %73, %62 : vector<16x16xi1>, vector<16x16xf32>
    %cst_20 = arith.constant dense<0xFF800000> : vector<16xf32>
    %75 = vector.multi_reduction <maximumf>, %74, %cst_20 [1] : vector<16x16xf32> to vector<16xf32>
    %76 = vector.shape_cast %75 : vector<16xf32> to vector<16x1xf32>
    %77 = vector.broadcast %76 : vector<16x1xf32> to vector<16x16xf32>
    %78 = arith.cmpf oeq, %74, %77 : vector<16x16xf32>
    %c16_i32_21 = arith.constant 16 : i32
    %79 = vector.broadcast %c16_i32_21 : i32 to vector<16x16xi32>
    %80 = arith.select %78, %8, %79 : vector<16x16xi1>, vector<16x16xi32>
    %cst_22 = arith.constant dense<2147483647> : vector<16xi32>
    %81 = vector.multi_reduction <minsi>, %80, %cst_22 [1] : vector<16x16xi32> to vector<16xi32>
    %82 = vector.shape_cast %81 : vector<16xi32> to vector<16x1xi32>
    %83 = vector.broadcast %82 : vector<16x1xi32> to vector<16x16xi32>
    %84 = arith.cmpi eq, %8, %83 : vector<16x16xi32>
    %cst_23 = arith.constant 0xFF800000 : f32
    %85 = vector.broadcast %cst_23 : f32 to vector<16x16xf32>
    %86 = arith.select %84, %85, %74 : vector<16x16xi1>, vector<16x16xf32>
    %cst_24 = arith.constant dense<0xFF800000> : vector<16xf32>
    %87 = vector.multi_reduction <maximumf>, %86, %cst_24 [1] : vector<16x16xf32> to vector<16xf32>
    %88 = vector.shape_cast %87 : vector<16xf32> to vector<16x1xf32>
    %89 = vector.broadcast %88 : vector<16x1xf32> to vector<16x16xf32>
    %90 = arith.cmpf oeq, %86, %89 : vector<16x16xf32>
    %c16_i32_25 = arith.constant 16 : i32
    %91 = vector.broadcast %c16_i32_25 : i32 to vector<16x16xi32>
    %92 = arith.select %90, %8, %91 : vector<16x16xi1>, vector<16x16xi32>
    %cst_26 = arith.constant dense<2147483647> : vector<16xi32>
    %93 = vector.multi_reduction <minsi>, %92, %cst_26 [1] : vector<16x16xi32> to vector<16xi32>
    %94 = vector.shape_cast %93 : vector<16xi32> to vector<16x1xi32>
    %95 = vector.broadcast %94 : vector<16x1xi32> to vector<16x16xi32>
    %96 = arith.cmpi eq, %8, %95 : vector<16x16xi32>
    %cst_27 = arith.constant 0xFF800000 : f32
    %97 = vector.broadcast %cst_27 : f32 to vector<16x16xf32>
    %98 = arith.select %96, %97, %86 : vector<16x16xi1>, vector<16x16xf32>
    %cst_28 = arith.constant dense<0xFF800000> : vector<16xf32>
    %99 = vector.multi_reduction <maximumf>, %98, %cst_28 [1] : vector<16x16xf32> to vector<16xf32>
    %100 = vector.shape_cast %99 : vector<16xf32> to vector<16x1xf32>
    %101 = vector.broadcast %100 : vector<16x1xf32> to vector<16x16xf32>
    %102 = arith.cmpf oeq, %98, %101 : vector<16x16xf32>
    %c16_i32_29 = arith.constant 16 : i32
    %103 = vector.broadcast %c16_i32_29 : i32 to vector<16x16xi32>
    %104 = arith.select %102, %8, %103 : vector<16x16xi1>, vector<16x16xi32>
    %cst_30 = arith.constant dense<2147483647> : vector<16xi32>
    %105 = vector.multi_reduction <minsi>, %104, %cst_30 [1] : vector<16x16xi32> to vector<16xi32>
    %106 = vector.shape_cast %105 : vector<16xi32> to vector<16x1xi32>
    %107 = tpu.concatenate %64, %76, %88, %100 in 1 : vector<16x1xf32>, vector<16x1xf32>, vector<16x1xf32>, vector<16x1xf32> -> vector<16x4xf32>
    %108 = tpu.concatenate %70, %82, %94, %106 in 1 : vector<16x1xi32>, vector<16x1xi32>, vector<16x1xi32>, vector<16x1xi32> -> vector<16x4xi32>
    %cst_31 = arith.constant dense<0.000000e+00> : vector<16xf32>
    %109 = vector.multi_reduction <add>, %107, %cst_31 [1] : vector<16x4xf32> to vector<16xf32>
    %110 = vector.shape_cast %109 : vector<16xf32> to vector<16x1xf32>
    %111 = vector.broadcast %110 : vector<16x1xf32> to vector<16x4xf32>
    %112 = arith.divf %107, %111 : vector<16x4xf32>
    %cst_32 = arith.constant 2.500000e+00 : f32
    %113 = vector.broadcast %cst_32 : f32 to vector<16x4xf32>
    %114 = arith.mulf %112, %113 : vector<16x4xf32>
    %115 = tpu.bitcast %108 : vector<16x4xi32> -> vector<16x4xf32>
    %cst_33 = arith.constant 0.000000e+00 : f32
    %116 = vector.broadcast %cst_33 : f32 to vector<16x120xf32>
    %117 = tpu.concatenate %114, %115, %116 in 1 : vector<16x4xf32>, vector<16x4xf32>, vector<16x120xf32> -> vector<16x128xf32>
    %c0_34 = arith.constant 0 : index
    %c0_35 = arith.constant 0 : index
    %118 = vector.load %arg3[%c0_34, %c0_35] : memref<16x128xf32, #tpu.memory_space<vmem>>, vector<16x128xf32>
    tpu.vector_store %arg3[%c0_34, %c0_35], %117 {strides = array<i32>} : memref<16x128xf32, #tpu.memory_space<vmem>>, vector<16x128xf32>,
    return
  }
  func.func @transform_0(%arg0: i32) -> (i32, i32) {
    %c0_i32 = arith.constant 0 : i32
    %c0_i32_0 = arith.constant 0 : i32
    return %arg0, %c0_i32 : i32, i32
  }
  func.func @transform_1(%arg0: i32) -> (i32, i32) {
    %c0_i32 = arith.constant 0 : i32
    %c0_i32_0 = arith.constant 0 : i32
    %c0_i32_1 = arith.constant 0 : i32
    return %c0_i32, %c0_i32_0 : i32, i32
  }
  func.func @transform_2(%arg0: i32) -> (i32, i32) {
    %c0_i32 = arith.constant 0 : i32
    %c0_i32_0 = arith.constant 0 : i32
    return %arg0, %c0_i32 : i32, i32
  }
}

</mosaic_0001>

<llo_original>
// kernel: tpu_custom_call.1
$region0: #{tpu_custom_call.1}
  #allocation0 [shape = 'u32[]', space=smem, size = 0x4, offset = 0x4, fixed_abs, tag = 'smem constant byte address 0x4 - core index']
  #allocation1 [shape = 'u32[144,128]{1,0:T(1,128)}', space=vmem, size = 0x12000, scoped, tag = 'internal scratch']
  %s0 = inlined_call_operand.vmem [shape: f32[16,32], index: 0, kind: input, shape index: {}]
  %s1 = inlined_call_operand.vmem [shape: f32[32,16], index: 1, kind: input, shape index: {}]
  %s2 = inlined_call_operand.hbm [shape: f32[16,128], index: 2, kind: output, shape index: {}]
  %s3 = sld [smem:[#allocation0]]
  $region18: #{tpu_custom_call.1} parent=0
    _
  %s5 = ssub.s32 1, %s3
  %s6 = scalar_select 0, %s5, %s3
  $region1: #{tpu_custom_call.1} parent=0
    #allocation2 [shape = 'u8[8192]{0}', space=vmem, size = 0x2000, scoped, tag = 'output window, operand 0, single buffered']
    #allocation3 [shape = 's32[1]{0}', space=sflag, size = 0x4, scoped, tag = 'scoped memory for tpu_custom_call.1']
    %7 = vsyncpa [#allocation3], 0
    // Predicated region
    $region2: #{tpu_custom_call.1} parent=1 // pred_check
      _
    $region3: #{tpu_custom_call.1} parent=1 // pred_check_branch
      %9 = sbr.rel (0) target = $region5
    $region4: #{tpu_custom_call.1} parent=1 // pred_region
      _
    $region5: #{tpu_custom_call.1} parent=1 // pred_fallthru
      _
    // Predicated region
    $region6: #{tpu_custom_call.1} parent=1 // pred_check
      _
    $region7: #{tpu_custom_call.1} parent=1 // pred_check_branch
      %11 = sbr.rel (0) target = $region9
    $region8: #{tpu_custom_call.1} parent=1 // pred_region
      _
    $region9: #{tpu_custom_call.1} parent=1 // pred_fallthru
      _
    %v12 = vld [vmem:[%s0] sm:$0xff]
    %v13 = vld [vmem:[%s0 + $0x8] sm:$0xff]
    %v14 = vld [vmem:[%s1] sm:$0xff]
    %v15 = vld [vmem:[%s1 + $0x8] sm:$0xff]
    %v16 = vld [vmem:[%s1 + $0x10] sm:$0xff]
    %v17 = vld [vmem:[%s1 + $0x18] sm:$0xff]
    %vm18 = vcmask 261120
    %v20 = vsel %vm18, %v12, 0
    %v23 = vsel %vm18, %v13, 0
    %25 = vmatprep.subr.mxu0 0.0
    %26 = vmatpush1.msra.mxu0 %v14
    %27 = vmatprep.subr.mxu0 0.0
    %28 = vmatpush1.msra.mxu0 %v15
    %29 = vmatprep.subr.mxu0 0.0
    %30 = vmatpush1.msra.mxu0 %v16
    %31 = vmatprep.subr.mxu0 0.0
    %32 = vmatpush1.msra.mxu0 %v17
    %33 = vmatprep.subr.mxu0 0.0
    %34 = vmatpush1.msra.mxu0 0.0
    %35 = vmatprep.subr.mxu0 0.0
    %36 = vmatpush1.msra.mxu0 0.0
    %37 = vmatprep.subr.mxu0 0.0
    %38 = vmatpush1.msra.mxu0 0.0
    %39 = vmatprep.subr.mxu0 0.0
    %40 = vmatpush1.msra.mxu0 0.0
    %41 = vmatprep.subr.mxu0 0.0
    %42 = vmatpush1.msra.mxu0 0.0
    %43 = vmatprep.subr.mxu0 0.0
    %44 = vmatpush1.msra.mxu0 0.0
    %45 = vmatprep.subr.mxu0 0.0
    %46 = vmatpush1.msra.mxu0 0.0
    %47 = vmatprep.subr.mxu0 0.0
    %48 = vmatpush1.msra.mxu0 0.0
    %49 = vmatprep.subr.mxu0 0.0
    %50 = vmatpush1.msra.mxu0 0.0
    %51 = vmatprep.subr.mxu0 0.0
    %52 = vmatpush1.msra.mxu0 0.0
    %53 = vmatprep.subr.mxu0 0.0
    %54 = vmatpush1.msra.mxu0 0.0
    %55 = vmatprep.subr.mxu0 0.0
    %56 = vmatpush1.msra.mxu0 0.0
    %57 = vmatprep.subr.mxu0 0.0
    %58 = vmatpush1.msra.mxu0 0.0
    %59 = vmatprep.subr.mxu0 0.0
    %60 = vmatpush1.msra.mxu0 0.0
    %61 = vmatprep.subr.mxu0 0.0
    %62 = vmatpush1.msra.mxu0 0.0
    %63 = vmatprep.subr.mxu0 0.0
    %64 = vmatpush1.msra.mxu0 0.0
    %65 = vmatprep.subr.mxu0 0.0
    %66 = vmatpush1.msra.mxu0 0.0
    %67 = vmatprep.subr.mxu0 0.0
    %68 = vmatpush1.msra.mxu0 0.0
    %69 = vmatprep.subr.mxu0 0.0
    %70 = vmatpush1.msra.mxu0 0.0
    %71 = vmatprep.subr.mxu0 0.0
    %72 = vmatpush1.msra.mxu0 0.0
    %73 = vmatprep.subr.mxu0 0.0
    %74 = vmatpush1.msra.mxu0 0.0
    %75 = vmatprep.subr.mxu0 0.0
    %76 = vmatpush1.msra.mxu0 0.0
    %77 = vmatprep.subr.mxu0 0.0
    %78 = vmatpush1.msra.mxu0 0.0
    %79 = vmatprep.subr.mxu0 0.0
    %80 = vmatpush1.msra.mxu0 0.0
    %81 = vmatprep.subr.mxu0 0.0
    %82 = vmatpush1.msra.mxu0 0.0
    %83 = vmatprep.subr.mxu0 0.0
    %84 = vmatpush1.msra.mxu0 0.0
    %85 = vmatprep.subr.mxu0 0.0
    %86 = vmatpush1.msra.mxu0 0.0
    %87 = vmatprep.subr.mxu0 0.0
    %88 = vmatpush1.msra.mxu0 0.0
    %89 = vmatprep.mubr.f32.mxu0 0.0
    %90 = vmatmul.mubr.f32.gmra.mrb[0].mxu0 %v20
    %v91 = vpop.f32.mrb[0].mxu0
    %v92 = vadd.f32 0.0, %v91
    %v93 = vpop.f32.mrb[0].mxu0
    %94 = vmatprep.mubr.f32.mxu0 0.0
    %95 = vmatmul.mubr.f32.gmra.mrb[0].mxu0 %v23
    %v96 = vpop.f32.mrb[0].mxu0
    %v97 = vadd.f32 0.0, %v96
    %v98 = vpop.f32.mrb[0].mxu0
    %99 = vdwg.mxu0
    %v100 = vxor.u32 %v92, 2147483648
    %v101 = vxor.u32 %v97, 2147483648
    %v102 = vmul.f32 %v100, 1.442695
    %v103 = vpow.pop %v102
    %v104 = vmul.f32 %v101, 1.442695
    %v105 = vpow.pop %v104
    %v106 = vadd.f32 %v103, 1.0
    %v107 = vadd.f32 %v105, 1.0
    %v108 = vrcp.pop %v106
    %v109 = vmul.f32 1.0, %v108
    %v110 = vrcp.pop %v107
    %v111 = vmul.f32 1.0, %v110
    %v112 = vlaneseq
    %v113 = vand.u32 %v112, 127
    %vm114 = vcmask 31744
    %v115 = vsel %vm114, %v109, -inf
    %116 = vmax.xlane.f32.xlu0 %v115
    %v117 = vpop.xlane.xlu0 %116
    %v118 = vsel %vm114, %v111, -inf
    %119 = vmax.xlane.f32.xlu0 %v118
    %v120 = vpop.xlane.xlu0 %119
    %vm121 = vcmask 64544
    %v122 = vsel %vm121, %v109, -inf
    %123 = vmax.xlane.f32.xlu0 %v122
    %v124 = vpop.xlane.xlu0 %123
    %v125 = vsel %vm121, %v111, -inf
    %126 = vmax.xlane.f32.xlu0 %v125
    %v127 = vpop.xlane.xlu0 %126
    %vm128 = vcmask 97344
    %v129 = vsel %vm128, %v109, -inf
    %130 = vmax.xlane.f32.xlu0 %v129
    %v131 = vpop.xlane.xlu0 %130
    %v132 = vsel %vm128, %v111, -inf
    %133 = vmax.xlane.f32.xlu0 %v132
    %v134 = vpop.xlane.xlu0 %133
    %vm135 = vcmask 130144
    %v136 = vsel %vm135, %v109, -inf
    %137 = vmax.xlane.f32.xlu0 %v136
    %v138 = vpop.xlane.xlu0 %137
    %v139 = vsel %vm135, %v111, -inf
    %140 = vmax.xlane.f32.xlu0 %v139
    %v141 = vpop.xlane.xlu0 %140
    %vm142 = vcmask 7168
    %v143 = vsel %vm142, %v117, %v124
    %v144 = vsel %vm142, %v120, %v127
    %vm145 = vcmask 15360
    %v146 = vsel %vm145, %v143, %v131
    %v147 = vsel %vm145, %v144, %v134
    %vm148 = vcmask 23552
    %v149 = vsel %vm148, %v146, %v138
    %v150 = vsel %vm148, %v147, %v141
    %v151 = vsel %vm114, %v149, -inf
    %152 = vmax.xlane.f32.xlu0 %v151
    %v153 = vpop.xlane.xlu0 %152
    %v154 = vsel %vm114, %v150, -inf
    %155 = vmax.xlane.f32.xlu0 %v154
    %v156 = vpop.xlane.xlu0 %155
    %vm157 = vcmp.eq.f32.partialorder %v149, %v153
    %vm158 = vcmp.eq.f32.partialorder %v150, %v156
    %v159 = vsel %vm157, %v113, 4
    %v160 = vsel %vm158, %v113, 4
    %v161 = vsel %vm114, %v159, 2147483647
    %v162 = vand.u32 %v161, 65535
    %v163 = vshra.s32 %v161, 16
    %v164 = vcvt.s32.f32 %v162
    %v165 = vcvt.s32.f32 %v163
    %166 = vmin.xlane.f32.xlu0 %v165
    %v167 = vpop.xlane.xlu0 %166
    %vm168 = vcmp.eq.f32.partialorder %v165, %v167
    %v169 = vsel %vm168, %v164, inf
    %170 = vmin.xlane.f32.xlu0 %v169
    %v171 = vpop.xlane.xlu0 %170
    %v172 = vcvt.f32.s32 %v171
    %v173 = vcvt.f32.s32 %v167
    %v174 = vshll.u32 %v173, 16
    %v175 = vadd.s32 %v174, %v172
    %v176 = vsel %vm114, %v160, 2147483647
    %v177 = vand.u32 %v176, 65535
    %v178 = vshra.s32 %v176, 16
    %v179 = vcvt.s32.f32 %v177
    %v180 = vcvt.s32.f32 %v178
    %181 = vmin.xlane.f32.xlu0 %v180
    %v182 = vpop.xlane.xlu0 %181
    %vm183 = vcmp.eq.f32.partialorder %v180, %v182
    %v184 = vsel %vm183, %v179, inf
    %185 = vmin.xlane.f32.xlu0 %v184
    %v186 = vpop.xlane.xlu0 %185
    %v187 = vcvt.f32.s32 %v186
    %v188 = vcvt.f32.s32 %v182
    %v189 = vshll.u32 %v188, 16
    %v190 = vadd.s32 %v189, %v187
    %vm191 = vcmp.eq.s32.totalorder %v113, %v175
    %vm192 = vcmp.eq.s32.totalorder %v113, %v190
    %v193 = vsel %vm191, 1.0, 0.0
    %v194 = vsel %vm192, 1.0, 0.0
    %v195 = vsel %vm191, -inf, %v149
    %v196 = vsel %vm192, -inf, %v150
    %v197 = vsel %vm114, %v195, -inf
    %198 = vmax.xlane.f32.xlu0 %v197
    %v199 = vpop.xlane.xlu0 %198
    %v200 = vsel %vm114, %v196, -inf
    %201 = vmax.xlane.f32.xlu0 %v200
    %v202 = vpop.xlane.xlu0 %201
    %vm203 = vcmp.eq.f32.partialorder %v195, %v199
    %vm204 = vcmp.eq.f32.partialorder %v196, %v202
    %v205 = vsel %vm203, %v113, 4
    %v206 = vsel %vm204, %v113, 4
    %v207 = vsel %vm114, %v205, 2147483647
    %v208 = vand.u32 %v207, 65535
    %v209 = vshra.s32 %v207, 16
    %v210 = vcvt.s32.f32 %v208
    %v211 = vcvt.s32.f32 %v209
    %212 = vmin.xlane.f32.xlu0 %v211
    %v213 = vpop.xlane.xlu0 %212
    %vm214 = vcmp.eq.f32.partialorder %v211, %v213
    %v215 = vsel %vm214, %v210, inf
    %216 = vmin.xlane.f32.xlu0 %v215
    %v217 = vpop.xlane.xlu0 %216
    %v218 = vcvt.f32.s32 %v217
    %v219 = vcvt.f32.s32 %v213
    %v220 = vshll.u32 %v219, 16
    %v221 = vadd.s32 %v220, %v218
    %v222 = vsel %vm114, %v206, 2147483647
    %v223 = vand.u32 %v222, 65535
    %v224 = vshra.s32 %v222, 16
    %v225 = vcvt.s32.f32 %v223
    %v226 = vcvt.s32.f32 %v224
    %227 = vmin.xlane.f32.xlu0 %v226
    %v228 = vpop.xlane.xlu0 %227
    %vm229 = vcmp.eq.f32.partialorder %v226, %v228
    %v230 = vsel %vm229, %v225, inf
    %231 = vmin.xlane.f32.xlu0 %v230
    %v232 = vpop.xlane.xlu0 %231
    %v233 = vcvt.f32.s32 %v232
    %v234 = vcvt.f32.s32 %v228
    %v235 = vshll.u32 %v234, 16
    %v236 = vadd.s32 %v235, %v233
    %vm237 = vcmp.eq.s32.totalorder %v113, %v221
    %vm238 = vcmp.eq.s32.totalorder %v113, %v236
    %v239 = vsel %vm237, 1.0, %v193
    %v240 = vsel %vm238, 1.0, %v194
    %242 = vset.pattern.permute.xlu0 0
    %243 = vperm.xlu0 %242, %v239
    %v244 = vpop.permute.xlu0 %243
    %247 = vset.pattern.permute.xlu0 0
    %248 = vperm.xlu0 %247, %v240
    %v249 = vpop.permute.xlu0 %248
    %v251 = vmul.f32 %v109, %v244
    %v252 = vmul.f32 %v111, %v249
    %253 = vset.pattern.permute.xlu0 1
    %254 = vperm.xlu0 %253, %v239
    %v255 = vpop.permute.xlu0 %254
    %257 = vset.pattern.permute.xlu0 1
    %258 = vperm.xlu0 %257, %v240
    %v259 = vpop.permute.xlu0 %258
    %v261 = vmul.f32 %v109, %v255
    %v262 = vmul.f32 %v111, %v259
    %263 = vset.pattern.permute.xlu0 2
    %264 = vperm.xlu0 %263, %v239
    %v265 = vpop.permute.xlu0 %264
    %267 = vset.pattern.permute.xlu0 2
    %268 = vperm.xlu0 %267, %v240
    %v269 = vpop.permute.xlu0 %268
    %v271 = vmul.f32 %v109, %v265
    %v272 = vmul.f32 %v111, %v269
    %273 = vset.pattern.permute.xlu0 3
    %274 = vperm.xlu0 %273, %v239
    %v275 = vpop.permute.xlu0 %274
    %277 = vset.pattern.permute.xlu0 3
    %278 = vperm.xlu0 %277, %v240
    %v279 = vpop.permute.xlu0 %278
    %v281 = vmul.f32 %v109, %v275
    %v282 = vmul.f32 %v111, %v279
    %v283 = vsel %vm114, %v251, %v261
    %v284 = vsel %vm114, %v252, %v262
    %vm285 = vcmask 64512
    %v286 = vsel %vm285, %v283, %v271
    %v287 = vsel %vm285, %v284, %v272
    %vm288 = vcmask 97280
    %v289 = vsel %vm288, %v286, %v281
    %v290 = vsel %vm288, %v287, %v282
    %vm291 = vcmask 130048
    %v292 = vsel %vm291, %v289, -inf
    %293 = vmax.xlane.f32.xlu0 %v292
    %v294 = vpop.xlane.xlu0 %293
    %v295 = vsel %vm291, %v290, -inf
    %296 = vmax.xlane.f32.xlu0 %v295
    %v297 = vpop.xlane.xlu0 %296
    %vm298 = vcmp.eq.f32.partialorder %v289, %v294
    %vm299 = vcmp.eq.f32.partialorder %v290, %v297
    %v300 = vsel %vm298, %v113, 16
    %v301 = vsel %vm299, %v113, 16
    %v302 = vsel %vm291, %v300, 2147483647
    %v303 = vand.u32 %v302, 65535
    %v304 = vshra.s32 %v302, 16
    %v305 = vcvt.s32.f32 %v303
    %v306 = vcvt.s32.f32 %v304
    %307 = vmin.xlane.f32.xlu0 %v306
    %v308 = vpop.xlane.xlu0 %307
    %vm309 = vcmp.eq.f32.partialorder %v306, %v308
    %v310 = vsel %vm309, %v305, inf
    %311 = vmin.xlane.f32.xlu0 %v310
    %v312 = vpop.xlane.xlu0 %311
    %v313 = vcvt.f32.s32 %v312
    %v314 = vcvt.f32.s32 %v308
    %v315 = vshll.u32 %v314, 16
    %v316 = vadd.s32 %v315, %v313
    %v317 = vsel %vm291, %v301, 2147483647
    %v318 = vand.u32 %v317, 65535
    %v319 = vshra.s32 %v317, 16
    %v320 = vcvt.s32.f32 %v318
    %v321 = vcvt.s32.f32 %v319
    %322 = vmin.xlane.f32.xlu0 %v321
    %v323 = vpop.xlane.xlu0 %322
    %vm324 = vcmp.eq.f32.partialorder %v321, %v323
    %v325 = vsel %vm324, %v320, inf
    %326 = vmin.xlane.f32.xlu0 %v325
    %v327 = vpop.xlane.xlu0 %326
    %v328 = vcvt.f32.s32 %v327
    %v329 = vcvt.f32.s32 %v323
    %v330 = vshll.u32 %v329, 16
    %v331 = vadd.s32 %v330, %v328
    %vm332 = vcmp.eq.s32.totalorder %v113, %v316
    %vm333 = vcmp.eq.s32.totalorder %v113, %v331
    %v334 = vsel %vm332, -inf, %v289
    %v335 = vsel %vm333, -inf, %v290
    %v336 = vsel %vm291, %v334, -inf
    %337 = vmax.xlane.f32.xlu0 %v336
    %v338 = vpop.xlane.xlu0 %337
    %v339 = vsel %vm291, %v335, -inf
    %340 = vmax.xlane.f32.xlu0 %v339
    %v341 = vpop.xlane.xlu0 %340
    %vm342 = vcmp.eq.f32.partialorder %v334, %v338
    %vm343 = vcmp.eq.f32.partialorder %v335, %v341
    %v344 = vsel %vm342, %v113, 16
    %v345 = vsel %vm343, %v113, 16
    %v346 = vsel %vm291, %v344, 2147483647
    %v347 = vand.u32 %v346, 65535
    %v348 = vshra.s32 %v346, 16
    %v349 = vcvt.s32.f32 %v347
    %v350 = vcvt.s32.f32 %v348
    %351 = vmin.xlane.f32.xlu0 %v350
    %v352 = vpop.xlane.xlu0 %351
    %vm353 = vcmp.eq.f32.partialorder %v350, %v352
    %v354 = vsel %vm353, %v349, inf
    %355 = vmin.xlane.f32.xlu0 %v354
    %v356 = vpop.xlane.xlu0 %355
    %v357 = vcvt.f32.s32 %v356
    %v358 = vcvt.f32.s32 %v352
    %v359 = vshll.u32 %v358, 16
    %v360 = vadd.s32 %v359, %v357
    %v361 = vsel %vm291, %v345, 2147483647
    %v362 = vand.u32 %v361, 65535
    %v363 = vshra.s32 %v361, 16
    %v364 = vcvt.s32.f32 %v362
    %v365 = vcvt.s32.f32 %v363
    %366 = vmin.xlane.f32.xlu0 %v365
    %v367 = vpop.xlane.xlu0 %366
    %vm368 = vcmp.eq.f32.partialorder %v365, %v367
    %v369 = vsel %vm368, %v364, inf
    %370 = vmin.xlane.f32.xlu0 %v369
    %v371 = vpop.xlane.xlu0 %370
    %v372 = vcvt.f32.s32 %v371
    %v373 = vcvt.f32.s32 %v367
    %v374 = vshll.u32 %v373, 16
    %v375 = vadd.s32 %v374, %v372
    %vm376 = vcmp.eq.s32.totalorder %v113, %v360
    %vm377 = vcmp.eq.s32.totalorder %v113, %v375
    %v378 = vsel %vm376, -inf, %v334
    %v379 = vsel %vm377, -inf, %v335
    %v380 = vsel %vm291, %v378, -inf
    %381 = vmax.xlane.f32.xlu0 %v380
    %v382 = vpop.xlane.xlu0 %381
    %v383 = vsel %vm291, %v379, -inf
    %384 = vmax.xlane.f32.xlu0 %v383
    %v385 = vpop.xlane.xlu0 %384
    %vm386 = vcmp.eq.f32.partialorder %v378, %v382
    %vm387 = vcmp.eq.f32.partialorder %v379, %v385
    %v388 = vsel %vm386, %v113, 16
    %v389 = vsel %vm387, %v113, 16
    %v390 = vsel %vm291, %v388, 2147483647
    %v391 = vand.u32 %v390, 65535
    %v392 = vshra.s32 %v390, 16
    %v393 = vcvt.s32.f32 %v391
    %v394 = vcvt.s32.f32 %v392
    %395 = vmin.xlane.f32.xlu0 %v394
    %v396 = vpop.xlane.xlu0 %395
    %vm397 = vcmp.eq.f32.partialorder %v394, %v396
    %v398 = vsel %vm397, %v393, inf
    %399 = vmin.xlane.f32.xlu0 %v398
    %v400 = vpop.xlane.xlu0 %399
    %v401 = vcvt.f32.s32 %v400
    %v402 = vcvt.f32.s32 %v396
    %v403 = vshll.u32 %v402, 16
    %v404 = vadd.s32 %v403, %v401
    %v405 = vsel %vm291, %v389, 2147483647
    %v406 = vand.u32 %v405, 65535
    %v407 = vshra.s32 %v405, 16
    %v408 = vcvt.s32.f32 %v406
    %v409 = vcvt.s32.f32 %v407
    %410 = vmin.xlane.f32.xlu0 %v409
    %v411 = vpop.xlane.xlu0 %410
    %vm412 = vcmp.eq.f32.partialorder %v409, %v411
    %v413 = vsel %vm412, %v408, inf
    %414 = vmin.xlane.f32.xlu0 %v413
    %v415 = vpop.xlane.xlu0 %414
    %v416 = vcvt.f32.s32 %v415
    %v417 = vcvt.f32.s32 %v411
    %v418 = vshll.u32 %v417, 16
    %v419 = vadd.s32 %v418, %v416
    %vm420 = vcmp.eq.s32.totalorder %v113, %v404
    %vm421 = vcmp.eq.s32.totalorder %v113, %v419
    %v422 = vsel %vm420, -inf, %v378
    %v423 = vsel %vm421, -inf, %v379
    %v424 = vsel %vm291, %v422, -inf
    %425 = vmax.xlane.f32.xlu0 %v424
    %v426 = vpop.xlane.xlu0 %425
    %v427 = vsel %vm291, %v423, -inf
    %428 = vmax.xlane.f32.xlu0 %v427
    %v429 = vpop.xlane.xlu0 %428
    %vm430 = vcmp.eq.f32.partialorder %v422, %v426
    %vm431 = vcmp.eq.f32.partialorder %v423, %v429
    %v432 = vsel %vm430, %v113, 16
    %v433 = vsel %vm431, %v113, 16
    %v434 = vsel %vm291, %v432, 2147483647
    %v435 = vand.u32 %v434, 65535
    %v436 = vshra.s32 %v434, 16
    %v437 = vcvt.s32.f32 %v435
    %v438 = vcvt.s32.f32 %v436
    %439 = vmin.xlane.f32.xlu0 %v438
    %v440 = vpop.xlane.xlu0 %439
    %vm441 = vcmp.eq.f32.partialorder %v438, %v440
    %v442 = vsel %vm441, %v437, inf
    %443 = vmin.xlane.f32.xlu0 %v442
    %v444 = vpop.xlane.xlu0 %443
    %v445 = vcvt.f32.s32 %v444
    %v446 = vcvt.f32.s32 %v440
    %v447 = vshll.u32 %v446, 16
    %v448 = vadd.s32 %v447, %v445
    %v449 = vsel %vm291, %v433, 2147483647
    %v450 = vand.u32 %v449, 65535
    %v451 = vshra.s32 %v449, 16
    %v452 = vcvt.s32.f32 %v450
    %v453 = vcvt.s32.f32 %v451
    %454 = vmin.xlane.f32.xlu0 %v453
    %v455 = vpop.xlane.xlu0 %454
    %vm456 = vcmp.eq.f32.partialorder %v453, %v455
    %v457 = vsel %vm456, %v452, inf
    %458 = vmin.xlane.f32.xlu0 %v457
    %v459 = vpop.xlane.xlu0 %458
    %v460 = vcvt.f32.s32 %v459
    %v461 = vcvt.f32.s32 %v455
    %v462 = vshll.u32 %v461, 16
    %v463 = vadd.s32 %v462, %v460
    %v464 = vsel %vm142, %v294, %v338
    %v465 = vsel %vm142, %v297, %v341
    %v466 = vsel %vm145, %v464, %v382
    %v467 = vsel %vm145, %v465, %v385
    %v468 = vsel %vm148, %v466, %v426
    %v469 = vsel %vm148, %v467, %v429
    %v470 = vsel %vm142, %v316, %v360
    %v471 = vsel %vm142, %v331, %v375
    %v472 = vsel %vm145, %v470, %v404
    %v473 = vsel %vm145, %v471, %v419
    %v474 = vsel %vm148, %v472, %v448
    %v475 = vsel %vm148, %v473, %v463
    %v476 = vsel %vm114, %v468, 0.0
    %477 = vadd.xlane.f32.xlu0 %v476
    %v478 = vpop.xlane.xlu0 %477
    %v479 = vsel %vm114, %v469, 0.0
    %480 = vadd.xlane.f32.xlu0 %v479
    %v481 = vpop.xlane.xlu0 %480
    %v482 = vrcp.pop %v478
    %v483 = vmul.f32 %v468, %v482
    %v484 = vrcp.pop %v481
    %v485 = vmul.f32 %v469, %v484
    %v486 = vmul.f32 %v483, 2.5
    %v487 = vmul.f32 %v485, 2.5
    %488 = vrot.lane.b32.xlu0 %v474, 4
    %v489 = vpop.permute.xlu0 %488
    %490 = vrot.lane.b32.xlu0 %v475, 4
    %v491 = vpop.permute.xlu0 %490
    %v494 = vsel %vm114, %v486, %v489
    %v495 = vsel %vm114, %v487, %v491
    %v496 = vsel %vm285, %v494, 0.0
    %v497 = vsel %vm285, %v495, 0.0
    %498 = vst [vmem:[#allocation2] sm:$0xff] %v496
    %499 = vst [vmem:[#allocation2 + $0x8] sm:$0xff] %v497
    // Predicated region
    $region10: #{tpu_custom_call.1} parent=1 // pred_check
      _
    $region11: #{tpu_custom_call.1} parent=1 // pred_check_branch
      %501 = sbr.rel (0) target = $region13
    $region12: #{tpu_custom_call.1} parent=1 // pred_region
      %s503 = ssub.s32 256, 256
      %504 = vsyncadd [#allocation3], %s503
      %s505 = sshll.u32 [#allocation2], 4
      %s506 = int_to_ptr.vmem [resolvable:$true] %s505
      %511 = dma.vmem_to_hbm [thread:$0]  %s506, 256, %s2, [#allocation3], 128, 128, 8
    $region13: #{tpu_custom_call.1} parent=1 // pred_fallthru
      _
    // Predicated region
    $region14: #{tpu_custom_call.1} parent=1 // pred_check
      _
    $region15: #{tpu_custom_call.1} parent=1 // pred_check_branch
      %513 = sbr.rel (0) target = $region17
    $region16: #{tpu_custom_call.1} parent=1 // pred_region
      %514 = dma.done [#allocation3], 256
    $region17: #{tpu_custom_call.1} parent=1 // pred_fallthru
      _
    %515 = vsyncpa [#allocation3], 1

</llo_original>
